<compile_context>
chip_gen: v5e
topology: v5e:2x2
jax: 0.10.0
libtpu: 0.0.40
codegen_flags: <defaults>
</compile_context>

<pallas_src>
from functools import partial

import numpy as np
import jax
import jax.numpy as jnp
from jax.experimental import pallas as pl
from jax.experimental.pallas import tpu as pltpu


def _atom_selector_kernel(tmask_ref, atom_lane_ref, collapse_ref,
                          pos_ref, mask_ref, pos_out_ref, mask_out_ref):
    # tmask_ref:     (TL, A)      int32  1 where atom name is a target atom
    # atom_lane_ref: (1, 3A)      int32  atom index owning each coord lane
    # collapse_ref:  (3A, 3)      f32    constant: collapse A groups of 3
    # pos_ref:       (1, TL, 3A)  f32    native (..., A, 3) layout, flattened
    # mask_ref:      (1, TL, A)   f32
    # pos_out_ref:   (1, TL, 3)   f32
    # mask_out_ref:  (1, TL, 1)   f32
    A = tmask_ref.shape[1]

    valid = (mask_ref[0] != 0) & (tmask_ref[...] != 0)                 # (TL, A)

    # Index of the first valid target atom per residue (A if none): lane reduce.
    idx = jax.lax.broadcasted_iota(jnp.int32, valid.shape, 1)          # (TL, A)
    first = jnp.min(jnp.where(valid, idx, A), axis=1, keepdims=True)   # (TL, 1)
    has = first < A                                                    # (TL, 1)

    # Select that atom's 3 coords.  where-select (NOT a multiply) so NaN/Inf
    # in non-selected or overhang atoms cannot pollute the result, and no
    # extra full-tile temporary the size of pos is materialized.
    pos = pos_ref[0]                                                   # (TL, 3A)
    sel = (atom_lane_ref[...] == first) & has                          # (TL, 3A)
    picked = jnp.where(sel, pos, 0.0)                                  # (TL, 3A)

    # Collapse the A groups of 3 lanes -> (TL, 3) with a tiny constant matmul
    # on the otherwise idle MXU (exact: one nonzero summand per output).
    pos_out_ref[0] = jnp.dot(picked, collapse_ref[...],
                             preferred_element_type=jnp.float32)       # (TL, 3)
    mask_out_ref[0] = has.astype(jnp.float32)                          # (TL, 1)


def _build_target_mask(atom_names, target_atoms, L, A, rows):
    """Host-side string membership (no Pallas equivalent for strings).
    Zero-padded to `rows` = n_l*TL so its blocks never overhang and the
    ragged-edge rows of the big tensors select nothing."""
    names = np.asarray(atom_names)                                # (L, A) unicode
    hit = np.isin(names, np.asarray(list(target_atoms)))          # (L, A) bool
    tm = np.zeros((rows, A), dtype=np.int32)
    tm[:L, :] = hit.astype(np.int32)
    return jnp.asarray(tm)


@partial(jax.jit, static_argnames=("tl",))
def _atom_selector_impl(tmask, pos_atoms, mask_atoms, *, tl):
    N, L, A, C = pos_atoms.shape
    n_l = pl.cdiv(L, tl)

    # Free relayouts: merge contiguous minor dims (bitcast) / dtype no-ops.
    pos_flat = pos_atoms.astype(jnp.float32).reshape(N, L, A * C)      # (N, L, 3A)
    mask_f = mask_atoms.astype(jnp.float32)                            # (N, L, A)

    # Small constant helper arrays (trace-time constants, fetched once).
    atom_lane = jnp.asarray(
        np.repeat(np.arange(A, dtype=np.int32), C).reshape(1, A * C))  # (1, 3A)
    collapse = jnp.asarray(np.tile(np.eye(C, dtype=np.float32), (A, 1)))  # (3A, C)

    pos_out, mask_out = pl.pallas_call(
        _atom_selector_kernel,
        out_shape=(jax.ShapeDtypeStruct((N, L, C), jnp.float32),
                   jax.ShapeDtypeStruct((N, L, 1), jnp.float32)),
        grid_spec=pltpu.PrefetchScalarGridSpec(
            num_scalar_prefetch=0,
            grid=(n_l, N),          # n innermost: tmask/constants DMA'd once
            in_specs=[
                pl.BlockSpec((tl, A), lambda l, n: (l, 0)),            # target mask
                pl.BlockSpec((1, A * C), lambda l, n: (0, 0)),         # atom_lane
                pl.BlockSpec((A * C, C), lambda l, n: (0, 0)),         # collapse
                pl.BlockSpec((1, tl, A * C), lambda l, n: (n, l, 0)),  # positions
                pl.BlockSpec((1, tl, A), lambda l, n: (n, l, 0)),      # atom mask
            ],
            out_specs=[
                pl.BlockSpec((1, tl, C), lambda l, n: (n, l, 0)),      # pos_out
                pl.BlockSpec((1, tl, 1), lambda l, n: (n, l, 0)),      # mask_out
            ],
        ),
        compiler_params=pltpu.CompilerParams(
            dimension_semantics=("parallel", "parallel"),
            vmem_limit_bytes=32 * 1024 * 1024,
        ),
    )(tmask, atom_lane, collapse, pos_flat, mask_f)
    return pos_out, mask_out[..., 0]


def atom_selector_forward(pos_atoms, mask_atoms, atom_names, target_atoms):
    """pos_atoms (N,L,A,3), mask_atoms (N,L,A) -> pos_out (N,L,3), mask_out (N,L)."""
    N, L, A, _ = pos_atoms.shape

    # --- tile selection ------------------------------------------------------
    # Prefer full-L tiles (rows must be a multiple of 8 = sublane tile), cap at
    # 1024 rows (~6.5 KB/row per step; bigger tiles buy nothing, HBM-bound).
    tl = min(((L + 7) // 8) * 8, 1024)
    # Keep >= ~8 grid steps when possible so both v7x TensorCores stream with
    # live input/output double-buffering (and the single-TC pipeline stays full).
    while N * pl.cdiv(L, tl) < 8 and tl > 256:
        new_tl = max(256, ((tl // 2 + 7) // 8) * 8)
        if new_tl >= tl:
            break
        tl = new_tl
    n_l = pl.cdiv(L, tl)

    tmask = _build_target_mask(atom_names, target_atoms, L, A, n_l * tl)
    return _atom_selector_impl(tmask, pos_atoms, mask_atoms, tl=tl)


def _reference(pos_atoms, mask_atoms, atom_names, target_atoms):
    """NumPy port of the PyTorch forward (for verification)."""
    pos = np.asarray(pos_atoms, dtype=np.float32)
    mask = np.asarray(mask_atoms, dtype=np.float32)
    N, L, A = pos.shape[:3]
    tm = np.zeros((L, A), dtype=bool)
    for i in range(L):
        for j in range(A):
            tm[i, j] = atom_names[i][j] in target_atoms
    sel_pos = pos * tm[None, :, :, None]
    sel_mask = mask * tm[None, :, :]
    pos_out = np.zeros((N, L, 3), np.float32)
    mask_out = np.zeros((N, L), np.float32)
    for n in range(N):
        for i in range(L):
            va = np.nonzero(sel_mask[n, i])[0]
            if len(va) > 0:
                pos_out[n, i] = sel_pos[n, i, va[0]]
                mask_out[n, i] = 1.0
    return pos_out, mask_out


if __name__ == "__main__":
    key = jax.random.PRNGKey(0)

    atom_pool = ["N", "CA", "C", "O", "CB", "CG", "CD", "CE",
                 "NZ", "OG", "SD", "C1'", "C2'", "C3'", "C4'", "P"]
    target_atoms = ["CA", "C4'"]

    def make_case(k, N, L, A):
        atom_names = [[atom_pool[(i + j) % len(atom_pool)] for j in range(A)]
                      for i in range(L)]
        k1, k2 = jax.random.split(k)
        pos = jax.random.normal(k1, (N, L, A, 3), dtype=jnp.float32)
        mask = (jax.random.uniform(k2, (N, L, A)) > 0.3).astype(jnp.float32)
        # Poison masked-out atoms with NaN: the reference never reads them and
        # the kernel must not let them leak (where-select, not multiply).
        pos = jnp.where(mask[..., None] == 0, jnp.nan, pos)
        return pos, mask, atom_names

    # main small case + a ragged-L case exercising the overhang edge tile.
    cases = [(2, 8, 16), (2, 13, 16)]
    keys = jax.random.split(key, len(cases))
    for k, (N, L, A) in zip(keys, cases):
        pos_atoms, mask_atoms, atom_names = make_case(k, N, L, A)
        pos_out, mask_out = atom_selector_forward(pos_atoms, mask_atoms,
                                                  atom_names, target_atoms)
        jax.block_until_ready((pos_out, mask_out))

        ref_pos, ref_mask = _reference(pos_atoms, mask_atoms, atom_names,
                                       target_atoms)
        np.testing.assert_allclose(np.asarray(pos_out), ref_pos,
                                   atol=1e-6, rtol=1e-6)
        np.testing.assert_allclose(np.asarray(mask_out), ref_mask,
                                   atol=1e-6, rtol=1e-6)

    print("KERNEL_OK")
</pallas_src>

<mosaic_0001>
module attributes {stable_mosaic.version = 11 : i64} {
  func.func @_atom_selector_kernel(%arg0: i32, %arg1: i32, %arg2: memref<8x16xi32, #tpu.memory_space<vmem>>, %arg3: memref<1x48xi32, #tpu.memory_space<vmem>>, %arg4: memref<48x3xf32, #tpu.memory_space<vmem>>, %arg5: memref<1x8x48xf32, #tpu.memory_space<vmem>>, %arg6: memref<1x8x16xf32, #tpu.memory_space<vmem>>, %arg7: memref<1x8x3xf32, #tpu.memory_space<vmem>>, %arg8: memref<1x8x1xf32, #tpu.memory_space<vmem>>) attributes {dimension_semantics = [#tpu.dimension_semantics<parallel>, #tpu.dimension_semantics<parallel>], iteration_bounds = array<i64: 1, 2>, scalar_prefetch = 0 : i64, scratch_operands = 0 : i64, tpu.core_type = #tpu.core_type<tc>, window_params = [{transform_indices = @transform_0, window_bounds = array<i64: 8, 16>}, {pipeline_mode = #tpu.pipeline_mode<synchronous>, transform_indices = @transform_1, window_bounds = array<i64: 1, 48>}, {pipeline_mode = #tpu.pipeline_mode<synchronous>, transform_indices = @transform_2, window_bounds = array<i64: 48, 3>}, {transform_indices = @transform_3, window_bounds = array<i64: 1, 8, 48>}, {transform_indices = @transform_4, window_bounds = array<i64: 1, 8, 16>}, {transform_indices = @transform_5, window_bounds = array<i64: 1, 8, 3>}, {transform_indices = @transform_6, window_bounds = array<i64: 1, 8, 1>}]} {
    %c0 = arith.constant 0 : index
    %c0_0 = arith.constant 0 : index
    %c0_1 = arith.constant 0 : index
    %0 = vector.load %arg6[%c0, %c0_0, %c0_1] : memref<1x8x16xf32, #tpu.memory_space<vmem>>, vector<1x8x16xf32>
    %1 = vector.shape_cast %0 : vector<1x8x16xf32> to vector<8x16xf32>
    %cst = arith.constant 0.000000e+00 : f32
    %2 = vector.broadcast %cst : f32 to vector<8x16xf32>
    %3 = arith.cmpf one, %1, %2 : vector<8x16xf32>
    %c0_2 = arith.constant 0 : index
    %c0_3 = arith.constant 0 : index
    %4 = vector.load %arg2[%c0_2, %c0_3] : memref<8x16xi32, #tpu.memory_space<vmem>>, vector<8x16xi32>
    %c0_i32 = arith.constant 0 : i32
    %5 = vector.broadcast %c0_i32 : i32 to vector<8x16xi32>
    %6 = arith.cmpi ne, %4, %5 : vector<8x16xi32>
    %7 = arith.andi %3, %6 : vector<8x16xi1>
    %8 = tpu.iota {dimensions = array<i32: 1>} : vector<8x16xi32>
    %c16_i32 = arith.constant 16 : i32
    %9 = vector.broadcast %c16_i32 : i32 to vector<8x16xi32>
    %10 = arith.select %7, %8, %9 : vector<8x16xi1>, vector<8x16xi32>
    %cst_4 = arith.constant dense<2147483647> : vector<8xi32>
    %11 = vector.multi_reduction <minsi>, %10, %cst_4 [1] : vector<8x16xi32> to vector<8xi32>
    %12 = vector.shape_cast %11 : vector<8xi32> to vector<8x1xi32>
    %c16_i32_5 = arith.constant 16 : i32
    %13 = vector.broadcast %c16_i32_5 : i32 to vector<8x1xi32>
    %14 = arith.cmpi slt, %12, %13 : vector<8x1xi32>
    %c0_6 = arith.constant 0 : index
    %c0_7 = arith.constant 0 : index
    %c0_8 = arith.constant 0 : index
    %15 = vector.load %arg5[%c0_6, %c0_7, %c0_8] : memref<1x8x48xf32, #tpu.memory_space<vmem>>, vector<1x8x48xf32>
    %16 = vector.shape_cast %15 : vector<1x8x48xf32> to vector<8x48xf32>
    %c0_9 = arith.constant 0 : index
    %c0_10 = arith.constant 0 : index
    %17 = vector.load %arg3[%c0_9, %c0_10] : memref<1x48xi32, #tpu.memory_space<vmem>>, vector<1x48xi32>
    %18 = vector.broadcast %17 : vector<1x48xi32> to vector<8x48xi32>
    %19 = vector.broadcast %12 : vector<8x1xi32> to vector<8x48xi32>
    %20 = arith.cmpi eq, %18, %19 : vector<8x48xi32>
    %21 = vector.broadcast %14 : vector<8x1xi1> to vector<8x48xi1>
    %22 = arith.andi %20, %21 : vector<8x48xi1>
    %cst_11 = arith.constant 0.000000e+00 : f32
    %23 = vector.broadcast %cst_11 : f32 to vector<8x48xf32>
    %24 = arith.select %22, %16, %23 : vector<8x48xi1>, vector<8x48xf32>
    %c0_12 = arith.constant 0 : index
    %c0_13 = arith.constant 0 : index
    %25 = vector.load %arg4[%c0_12, %c0_13] : memref<48x3xf32, #tpu.memory_space<vmem>>, vector<48x3xf32>
    %cst_14 = arith.constant dense<0.000000e+00> : vector<8x3xf32>
    %26 = tpu.matmul %24, %25, %cst_14 {dimension_numbers = #tpu.dot_dimension_numbers<[1], [0], [0], [1], [0, 0, 1, 1], [], []>} : vector<8x48xf32>, vector<48x3xf32>, vector<8x3xf32> -> vector<8x3xf32>
    %c0_15 = arith.constant 0 : index
    %c0_16 = arith.constant 0 : index
    %c0_17 = arith.constant 0 : index
    %27 = vector.load %arg7[%c0_15, %c0_16, %c0_17] : memref<1x8x3xf32, #tpu.memory_space<vmem>>, vector<1x8x3xf32>
    %28 = vector.shape_cast %27 : vector<1x8x3xf32> to vector<8x3xf32>
    %29 = vector.shape_cast %26 : vector<8x3xf32> to vector<1x8x3xf32>
    tpu.vector_store %arg7[%c0_15, %c0_16, %c0_17], %29 {strides = array<i32>} : memref<1x8x3xf32, #tpu.memory_space<vmem>>, vector<1x8x3xf32>,
    %30 = arith.extui %14 : vector<8x1xi1> to vector<8x1xi32>
    %31 = arith.sitofp %30 : vector<8x1xi32> to vector<8x1xf32>
    %c0_18 = arith.constant 0 : index
    %c0_19 = arith.constant 0 : index
    %c0_20 = arith.constant 0 : index
    %32 = vector.load %arg8[%c0_18, %c0_19, %c0_20] : memref<1x8x1xf32, #tpu.memory_space<vmem>>, vector<1x8x1xf32>
    %33 = vector.shape_cast %32 : vector<1x8x1xf32> to vector<8x1xf32>
    %34 = vector.shape_cast %31 : vector<8x1xf32> to vector<1x8x1xf32>
    tpu.vector_store %arg8[%c0_18, %c0_19, %c0_20], %34 {strides = array<i32>} : memref<1x8x1xf32, #tpu.memory_space<vmem>>, vector<1x8x1xf32>,
    return
  }
  func.func @transform_0(%arg0: i32, %arg1: i32) -> (i32, i32) {
    %c0_i32 = arith.constant 0 : i32
    %c0_i32_0 = arith.constant 0 : i32
    return %arg0, %c0_i32 : i32, i32
  }
  func.func @transform_1(%arg0: i32, %arg1: i32) -> (i32, i32) {
    %c0_i32 = arith.constant 0 : i32
    %c0_i32_0 = arith.constant 0 : i32
    %c0_i32_1 = arith.constant 0 : i32
    return %c0_i32, %c0_i32_0 : i32, i32
  }
  func.func @transform_2(%arg0: i32, %arg1: i32) -> (i32, i32) {
    %c0_i32 = arith.constant 0 : i32
    %c0_i32_0 = arith.constant 0 : i32
    %c0_i32_1 = arith.constant 0 : i32
    return %c0_i32, %c0_i32_0 : i32, i32
  }
  func.func @transform_3(%arg0: i32, %arg1: i32) -> (i32, i32, i32) {
    %c0_i32 = arith.constant 0 : i32
    %c0_i32_0 = arith.constant 0 : i32
    return %arg1, %arg0, %c0_i32 : i32, i32, i32
  }
  func.func @transform_4(%arg0: i32, %arg1: i32) -> (i32, i32, i32) {
    %c0_i32 = arith.constant 0 : i32
    %c0_i32_0 = arith.constant 0 : i32
    return %arg1, %arg0, %c0_i32 : i32, i32, i32
  }
  func.func @transform_5(%arg0: i32, %arg1: i32) -> (i32, i32, i32) {
    %c0_i32 = arith.constant 0 : i32
    %c0_i32_0 = arith.constant 0 : i32
    return %arg1, %arg0, %c0_i32 : i32, i32, i32
  }
  func.func @transform_6(%arg0: i32, %arg1: i32) -> (i32, i32, i32) {
    %c0_i32 = arith.constant 0 : i32
    %c0_i32_0 = arith.constant 0 : i32
    return %arg1, %arg0, %c0_i32 : i32, i32, i32
  }
}

</mosaic_0001>

<llo_original>
// kernel: _atom_selector_impl.1
$region0: #{_atom_selector_impl.1}
  #allocation0 [shape = 'u32[]', space=smem, size = 0x4, offset = 0x4, fixed_abs, tag = 'smem constant byte address 0x4 - core index']
  #allocation1 [shape = 'u32[72,128]{1,0:T(1,128)}', space=vmem, size = 0x9000, scoped, tag = 'internal scratch']
  %s0 = inlined_call_operand.vmem [shape: s32[8,16], index: 0, kind: input, shape index: {}]
  %s1 = inlined_call_operand.vmem [shape: s32[1,48], index: 1, kind: input, shape index: {}]
  %s2 = inlined_call_operand.vmem [shape: f32[48,3], index: 2, kind: input, shape index: {}]
  %s3 = inlined_call_operand.vmem [shape: f32[2,8,48], index: 3, kind: input, shape index: {}]
  %s4 = inlined_call_operand.vmem [shape: f32[2,8,16], index: 4, kind: input, shape index: {}]
  %s5 = inlined_call_operand.vmem [shape: f32[2,8,3], index: 5, kind: output, shape index: {0}]
  %s6 = inlined_call_operand.vmem [shape: f32[2,8,1], index: 6, kind: output, shape index: {1}]
  %7 = xla_tuple %s5, %s6
  %s8 = sld [smem:[#allocation0]]
  $region61: #{_atom_selector_impl.1} parent=0
    _
  %s10 = ssub.s32 1, %s8
  %s11 = scalar_select 0, %s10, %s8
  loop: start=0, step=1, limit=4
  $region2: #{_atom_selector_impl.1} parent=0 // loop_pre_header
    _
  $region3: #{_atom_selector_impl.1} parent=0 // loop_header
    %s13 = sphi 0, %s17
    %p14 = scmp.ge.s32.totalorder %s13, 4
    %s20 = sphi 0, %s32
    %s21 = sphi 0, %s28
    %s22 = sphi 0, %s20
    %s23 = sphi 0, %s21
    %s24 = sphi 0, %s22
    %s25 = sphi 0, %s23
    %s35 = sphi 0, %s37
    %s38 = sphi 0, %s35
    %s39 = sphi 0, %s38
    %s55 = sphi 0, %s39
    %s59 = sphi 0, %s59
    %s61 = sphi 0, %s59
    %s62 = sphi 0, %s61
    %s76 = sphi 0, %s62
    %s80 = sphi 0, %s80
    %s82 = sphi 0, %s80
    %s83 = sphi 0, %s82
    %s97 = sphi 0, %s83
    %s105 = sphi 0, %s107
    %s108 = sphi 0, %s105
    %s109 = sphi 0, %s108
    %s125 = sphi 0, %s109
    %s133 = sphi 0, %s135
    %s136 = sphi 0, %s133
    %s137 = sphi 0, %s136
    %s153 = sphi 0, %s137
    %s161 = sphi 0, %s163
    %s164 = sphi 0, %s161
    %s165 = sphi 0, %s164
    %s181 = sphi 0, %s165
    %s189 = sphi 0, %s191
    %s192 = sphi 0, %s189
    %s193 = sphi 0, %s192
    %s209 = sphi 0, %s193
  $region4: #{_atom_selector_impl.1} parent=0 // loop_header_branch
    %16 = sbr.rel (%p14) target = $region8
  $region5: #{_atom_selector_impl.1} parent=0 // loop_body
    %s18 = ssub.s32 %s13, 1
    %s19 = ssub.s32 %s13, 2
    %s26 = sadd.s32 1, %s21
    %p27 = scmp.ge.s32.totalorder %s26, 2
    %s28 = scalar_select %p27, 0, %s26
    %s29 = sadd.s32 1, %s20
    %s30 = scalar_select %p27, %s29, %s20
    %p31 = scmp.ge.s32.totalorder %s30, 1
    %s32 = scalar_select %p31, 0, %s30
    %s33 = ssub.s32 %s20, %s32
    %p34 = scmp.eq.s32.totalorder %s33, 0
    %s36 = sadd.s32 %s35, 1
    %s37 = scalar_select %p34, %s35, %s36
    %p40 = pneg %p34
    %p41 = scmp.eq.s32.totalorder %s13, 1
    %p42 = por %p40, %p41
    %p43 = scmp.ne.s32.totalorder %s35, %s38
    %p44 = scmp.eq.s32.totalorder %s13, 0
    %p45 = por %p43, %p44
    %p46 = scmp.ne.s32.totalorder %s35, %s38
    %p47 = scmp.eq.s32.totalorder %s18, 1
    %p48 = por %p46, %p47
    %p49 = scmp.ne.s32.totalorder %s38, %s39
    %p50 = scmp.eq.s32.totalorder %s18, 0
    %p51 = por %p49, %p50
    %p52 = scmp.ne.s32.totalorder %s38, %s39
    %p53 = scmp.eq.s32.totalorder %s19, 1
    %p54 = por %p52, %p53
    %p56 = scmp.ne.s32.totalorder %s39, %s55
    %p57 = scmp.eq.s32.totalorder %s19, 0
    %p58 = por %p56, %p57
    %s60 = sadd.s32 %s59, 1
    %p63 = scmp.eq.s32.totalorder %s13, 1
    %p64 = scmp.ne.s32.totalorder %s59, %s61
    %p65 = scmp.eq.s32.totalorder %s13, 0
    %p66 = por %p64, %p65
    %p67 = scmp.ne.s32.totalorder %s59, %s61
    %p68 = scmp.eq.s32.totalorder %s18, 1
    %p69 = por %p67, %p68
    %p70 = scmp.ne.s32.totalorder %s61, %s62
    %p71 = scmp.eq.s32.totalorder %s18, 0
    %p72 = por %p70, %p71
    %p73 = scmp.ne.s32.totalorder %s61, %s62
    %p74 = scmp.eq.s32.totalorder %s19, 1
    %p75 = por %p73, %p74
    %p77 = scmp.ne.s32.totalorder %s62, %s76
    %p78 = scmp.eq.s32.totalorder %s19, 0
    %p79 = por %p77, %p78
    %s81 = sadd.s32 %s80, 1
    %p84 = scmp.eq.s32.totalorder %s13, 1
    %p85 = scmp.ne.s32.totalorder %s80, %s82
    %p86 = scmp.eq.s32.totalorder %s13, 0
    %p87 = por %p85, %p86
    %p88 = scmp.ne.s32.totalorder %s80, %s82
    %p89 = scmp.eq.s32.totalorder %s18, 1
    %p90 = por %p88, %p89
    %p91 = scmp.ne.s32.totalorder %s82, %s83
    %p92 = scmp.eq.s32.totalorder %s18, 0
    %p93 = por %p91, %p92
    %p94 = scmp.ne.s32.totalorder %s82, %s83
    %p95 = scmp.eq.s32.totalorder %s19, 1
    %p96 = por %p94, %p95
    %p98 = scmp.ne.s32.totalorder %s83, %s97
    %p99 = scmp.eq.s32.totalorder %s19, 0
    %p100 = por %p98, %p99
    %s101 = ssub.s32 %s21, %s28
    %s102 = ssub.s32 %s20, %s32
    %s103 = sor.u32 %s101, %s102
    %p104 = scmp.eq.s32.totalorder %s103, 0
    %s106 = sadd.s32 %s105, 1
    %s107 = scalar_select %p104, %s105, %s106
    %p110 = pneg %p104
    %p111 = scmp.eq.s32.totalorder %s13, 1
    %p112 = por %p110, %p111
    %p113 = scmp.ne.s32.totalorder %s105, %s108
    %p114 = scmp.eq.s32.totalorder %s13, 0
    %p115 = por %p113, %p114
    %p116 = scmp.ne.s32.totalorder %s105, %s108
    %p117 = scmp.eq.s32.totalorder %s18, 1
    %p118 = por %p116, %p117
    %p119 = scmp.ne.s32.totalorder %s108, %s109
    %p120 = scmp.eq.s32.totalorder %s18, 0
    %p121 = por %p119, %p120
    %p122 = scmp.ne.s32.totalorder %s108, %s109
    %p123 = scmp.eq.s32.totalorder %s19, 1
    %p124 = por %p122, %p123
    %p126 = scmp.ne.s32.totalorder %s109, %s125
    %p127 = scmp.eq.s32.totalorder %s19, 0
    %p128 = por %p126, %p127
    %s129 = ssub.s32 %s21, %s28
    %s130 = ssub.s32 %s20, %s32
    %s131 = sor.u32 %s129, %s130
    %p132 = scmp.eq.s32.totalorder %s131, 0
    %s134 = sadd.s32 %s133, 1
    %s135 = scalar_select %p132, %s133, %s134
    %p138 = pneg %p132
    %p139 = scmp.eq.s32.totalorder %s13, 1
    %p140 = por %p138, %p139
    %p141 = scmp.ne.s32.totalorder %s133, %s136
    %p142 = scmp.eq.s32.totalorder %s13, 0
    %p143 = por %p141, %p142
    %p144 = scmp.ne.s32.totalorder %s133, %s136
    %p145 = scmp.eq.s32.totalorder %s18, 1
    %p146 = por %p144, %p145
    %p147 = scmp.ne.s32.totalorder %s136, %s137
    %p148 = scmp.eq.s32.totalorder %s18, 0
    %p149 = por %p147, %p148
    %p150 = scmp.ne.s32.totalorder %s136, %s137
    %p151 = scmp.eq.s32.totalorder %s19, 1
    %p152 = por %p150, %p151
    %p154 = scmp.ne.s32.totalorder %s137, %s153
    %p155 = scmp.eq.s32.totalorder %s19, 0
    %p156 = por %p154, %p155
    %s157 = ssub.s32 %s21, %s28
    %s158 = ssub.s32 %s20, %s32
    %s159 = sor.u32 %s157, %s158
    %p160 = scmp.eq.s32.totalorder %s159, 0
    %s162 = sadd.s32 %s161, 1
    %s163 = scalar_select %p160, %s161, %s162
    %p166 = pneg %p160
    %p167 = scmp.eq.s32.totalorder %s13, 1
    %p168 = por %p166, %p167
    %p169 = scmp.ne.s32.totalorder %s161, %s164
    %p170 = scmp.eq.s32.totalorder %s13, 0
    %p171 = por %p169, %p170
    %p172 = scmp.ne.s32.totalorder %s161, %s164
    %p173 = scmp.eq.s32.totalorder %s18, 1
    %p174 = por %p172, %p173
    %p175 = scmp.ne.s32.totalorder %s164, %s165
    %p176 = scmp.eq.s32.totalorder %s18, 0
    %p177 = por %p175, %p176
    %p178 = scmp.ne.s32.totalorder %s164, %s165
    %p179 = scmp.eq.s32.totalorder %s19, 1
    %p180 = por %p178, %p179
    %p182 = scmp.ne.s32.totalorder %s165, %s181
    %p183 = scmp.eq.s32.totalorder %s19, 0
    %p184 = por %p182, %p183
    %s185 = ssub.s32 %s21, %s28
    %s186 = ssub.s32 %s20, %s32
    %s187 = sor.u32 %s185, %s186
    %p188 = scmp.eq.s32.totalorder %s187, 0
    %s190 = sadd.s32 %s189, 1
    %s191 = scalar_select %p188, %s189, %s190
    %p194 = pneg %p188
    %p195 = scmp.eq.s32.totalorder %s13, 1
    %p196 = por %p194, %p195
    %p197 = scmp.ne.s32.totalorder %s189, %s192
    %p198 = scmp.eq.s32.totalorder %s13, 0
    %p199 = por %p197, %p198
    %p200 = scmp.ne.s32.totalorder %s189, %s192
    %p201 = scmp.eq.s32.totalorder %s18, 1
    %p202 = por %p200, %p201
    %p203 = scmp.ne.s32.totalorder %s192, %s193
    %p204 = scmp.eq.s32.totalorder %s18, 0
    %p205 = por %p203, %p204
    %p206 = scmp.ne.s32.totalorder %s192, %s193
    %p207 = scmp.eq.s32.totalorder %s19, 1
    %p208 = por %p206, %p207
    %p210 = scmp.ne.s32.totalorder %s193, %s209
    %p211 = scmp.eq.s32.totalorder %s19, 0
    %p212 = por %p210, %p211
    %p213 = scmp.le.s32.totalorder 1, %s13
    %p214 = scmp.lt.s32.totalorder %s13, 3
    %p215 = pnand %p213, %p214
    %p216 = pneg %p215
    // Predicated region
    $region9: #{_atom_selector_impl.1} parent=5 // pred_check
      _
    $region10: #{_atom_selector_impl.1} parent=5 // pred_check_branch
      %218 = sbr.rel (%p215) target = $region12
    $region11: #{_atom_selector_impl.1} parent=5 // pred_region
      %s219 = ssub.s32 %s13, 1
      // Predicated region
      $region13: #{_atom_selector_impl.1} parent=11 // pred_check
        %p220 = pneg %p51
      $region14: #{_atom_selector_impl.1} parent=11 // pred_check_branch
        %222 = sbr.rel (%p220) target = $region16
      $region15: #{_atom_selector_impl.1} parent=11 // pred_region
        %p223 = scmp.lt.s32.totalorder %s22, 0
        %s224 = scalar_select %p223, %s22, 0
        %s225 = smul.addr %s224, 8
        %s226 = scalar_lea.vmem %s0, %s225
      $region16: #{_atom_selector_impl.1} parent=11 // pred_fallthru
        _
      // Predicated region
      $region17: #{_atom_selector_impl.1} parent=11 // pred_check
        %p227 = pneg %p72
      $region18: #{_atom_selector_impl.1} parent=11 // pred_check_branch
        %229 = sbr.rel (%p227) target = $region20
      $region19: #{_atom_selector_impl.1} parent=11 // pred_region
        _
      $region20: #{_atom_selector_impl.1} parent=11 // pred_fallthru
        _
      // Predicated region
      $region21: #{_atom_selector_impl.1} parent=11 // pred_check
        %p230 = pneg %p93
      $region22: #{_atom_selector_impl.1} parent=11 // pred_check_branch
        %232 = sbr.rel (%p230) target = $region24
      $region23: #{_atom_selector_impl.1} parent=11 // pred_region
        _
      $region24: #{_atom_selector_impl.1} parent=11 // pred_fallthru
        _
    $region12: #{_atom_selector_impl.1} parent=5 // pred_fallthru
      _
    %p233 = scmp.lt.s32.totalorder %s13, 2
    // Predicated region
    $region25: #{_atom_selector_impl.1} parent=5 // pred_check
      %p234 = pneg %p233
    $region26: #{_atom_selector_impl.1} parent=5 // pred_check_branch
      %236 = sbr.rel (%p234) target = $region28
    $region27: #{_atom_selector_impl.1} parent=5 // pred_region
      // Predicated region
      $region29: #{_atom_selector_impl.1} parent=27 // pred_check
        %p237 = pneg %p115
      $region30: #{_atom_selector_impl.1} parent=27 // pred_check_branch
        %239 = sbr.rel (%p237) target = $region32
      $region31: #{_atom_selector_impl.1} parent=27 // pred_region
        %p240 = scmp.lt.s32.totalorder %s21, 1
        %s241 = scalar_select %p240, %s21, 1
        %p242 = scmp.lt.s32.totalorder %s20, 0
        %s243 = scalar_select %p242, %s20, 0
        %s244 = sadd.s32 %s243, %s241
        %s245 = smul.addr %s244, 8
        %s246 = scalar_lea.vmem %s3, %s245
      $region32: #{_atom_selector_impl.1} parent=27 // pred_fallthru
        _
      // Predicated region
      $region33: #{_atom_selector_impl.1} parent=27 // pred_check
        %p247 = pneg %p143
      $region34: #{_atom_selector_impl.1} parent=27 // pred_check_branch
        %249 = sbr.rel (%p247) target = $region36
      $region35: #{_atom_selector_impl.1} parent=27 // pred_region
        %p250 = scmp.lt.s32.totalorder %s21, 1
        %s251 = scalar_select %p250, %s21, 1
        %p252 = scmp.lt.s32.totalorder %s20, 0
        %s253 = scalar_select %p252, %s20, 0
        %s254 = sadd.s32 %s253, %s251
        %s255 = smul.addr %s254, 8
        %s256 = scalar_lea.vmem %s4, %s255
      $region36: #{_atom_selector_impl.1} parent=27 // pred_fallthru
        _
    $region28: #{_atom_selector_impl.1} parent=5 // pred_fallthru
      _
    %p257 = scmp.le.s32.totalorder 1, %s13
    %p258 = scmp.lt.s32.totalorder %s13, 3
    %p259 = pnand %p257, %p258
    %p260 = pneg %p259
    // Predicated region
    $region37: #{_atom_selector_impl.1} parent=5 // pred_check
      _
    $region38: #{_atom_selector_impl.1} parent=5 // pred_check_branch
      %262 = sbr.rel (%p259) target = $region40
    $region39: #{_atom_selector_impl.1} parent=5 // pred_region
      %s263 = ssub.s32 %s13, 1
      %p264 = scmp.lt.s32.totalorder %s22, 0
      %s265 = scalar_select %p264, %s22, 0
      %s266 = smul.addr %s265, 8
      %s267 = scalar_lea.vmem %s0, %s266
      %p268 = pneg %p51
      %p269 = pneg %p48
      %p270 = pneg %p72
      %p271 = pneg %p69
      %p272 = pneg %p93
      %p273 = pneg %p90
      %p274 = scmp.lt.s32.totalorder %s23, 1
      %s275 = scalar_select %p274, %s23, 1
      %p276 = scmp.lt.s32.totalorder %s22, 0
      %s277 = scalar_select %p276, %s22, 0
      %s278 = sadd.s32 %s277, %s275
      %s279 = smul.addr %s278, 8
      %s280 = scalar_lea.vmem %s3, %s279
      %p281 = pneg %p121
      %p282 = pneg %p118
      %p283 = scmp.lt.s32.totalorder %s23, 1
      %s284 = scalar_select %p283, %s23, 1
      %p285 = scmp.lt.s32.totalorder %s22, 0
      %s286 = scalar_select %p285, %s22, 0
      %s287 = sadd.s32 %s286, %s284
      %s288 = smul.addr %s287, 8
      %s289 = scalar_lea.vmem %s4, %s288
      %p290 = pneg %p149
      %p291 = pneg %p146
      %p292 = pneg %p177
      %p293 = pneg %p174
      %p294 = scmp.lt.s32.totalorder %s23, 1
      %s295 = scalar_select %p294, %s23, 1
      %p296 = scmp.lt.s32.totalorder %s22, 0
      %s297 = scalar_select %p296, %s22, 0
      %s298 = sadd.s32 %s297, %s295
      %s299 = smul.addr %s298, 8
      %s300 = scalar_lea.vmem %s5, %s299
      %p301 = pneg %p205
      %p302 = pneg %p202
      %p303 = scmp.lt.s32.totalorder %s23, 1
      %s304 = scalar_select %p303, %s23, 1
      %p305 = scmp.lt.s32.totalorder %s22, 0
      %s306 = scalar_select %p305, %s22, 0
      %s307 = sadd.s32 %s306, %s304
      %s308 = smul.addr %s307, 8
      %s309 = scalar_lea.vmem %s6, %s308
      %p310 = scmp.lt.s32.totalorder %s22, 0
      %s311 = scalar_select %p310, %s22, 0
      %s312 = smul.addr %s311, 8
      %s313 = scalar_lea.vmem %s0, %s312
      %p314 = scmp.lt.s32.totalorder %s23, 1
      %s315 = scalar_select %p314, %s23, 1
      %p316 = scmp.lt.s32.totalorder %s22, 0
      %s317 = scalar_select %p316, %s22, 0
      %s318 = sadd.s32 %s317, %s315
      %s319 = smul.addr %s318, 8
      %s320 = scalar_lea.vmem %s3, %s319
      %p321 = scmp.lt.s32.totalorder %s23, 1
      %s322 = scalar_select %p321, %s23, 1
      %p323 = scmp.lt.s32.totalorder %s22, 0
      %s324 = scalar_select %p323, %s22, 0
      %s325 = sadd.s32 %s324, %s322
      %s326 = smul.addr %s325, 8
      %s327 = scalar_lea.vmem %s4, %s326
      %p328 = scmp.lt.s32.totalorder %s23, 1
      %s329 = scalar_select %p328, %s23, 1
      %p330 = scmp.lt.s32.totalorder %s22, 0
      %s331 = scalar_select %p330, %s22, 0
      %s332 = sadd.s32 %s331, %s329
      %s333 = smul.addr %s332, 8
      %s334 = scalar_lea.vmem %s5, %s333
      %p335 = scmp.lt.s32.totalorder %s23, 1
      %s336 = scalar_select %p335, %s23, 1
      %p337 = scmp.lt.s32.totalorder %s22, 0
      %s338 = scalar_select %p337, %s22, 0
      %s339 = sadd.s32 %s338, %s336
      %s340 = smul.addr %s339, 8
      %s341 = scalar_lea.vmem %s6, %s340
      %v342 = vld [vmem:[%s327] sm:$0xff]
      %vm343 = vcmp.ne.f32.partialorder %v342, 0.0
      %v344 = vld [vmem:[%s313] sm:$0xff]
      %vm345 = vcmp.ne.s32.totalorder %v344, 0
      %vm346 = vmand %vm343, %vm345
      %v347 = vlaneseq
      %v348 = vand.u32 %v347, 127
      %v349 = vsel %vm346, %v348, 16
      %vm350 = vcmask 130048
      %v351 = vsel %vm350, %v349, 2147483647
      %v352 = vand.u32 %v351, 65535
      %v353 = vshra.s32 %v351, 16
      %v354 = vcvt.s32.f32 %v352
      %v355 = vcvt.s32.f32 %v353
      %356 = vmin.xlane.f32.xlu0 %v355
      %v357 = vpop.xlane.xlu0 %356
      %vm358 = vcmp.eq.f32.partialorder %v355, %v357
      %v359 = vsel %vm358, %v354, inf
      %360 = vmin.xlane.f32.xlu0 %v359
      %v361 = vpop.xlane.xlu0 %360
      %v362 = vcvt.f32.s32 %v361
      %v363 = vcvt.f32.s32 %v357
      %v364 = vshll.u32 %v363, 16
      %v365 = vadd.s32 %v364, %v362
      %vm366 = vcmp.lt.s32.totalorder %v365, 16
      %v367 = vld [vmem:[%s320] sm:$0xff]
      %v368 = vld [vmem:[%s1] sm:$0x1]
      %v369 = vperm.slane %v368, 0
      %vm370 = vcmp.eq.s32.totalorder %v369, %v365
      %v371 = vsel %vm366, 1, 0
      %vm372 = vcmp.eq.s32.totalorder %v371, 1
      %vm373 = vmand %vm370, %vm372
      %v374 = vsel %vm373, %v367, 0.0
      %v375 = vld [vmem:[%s2] sm:$0xff]
      %v376 = vld [vmem:[%s2 + $0x8] sm:$0xff]
      %v377 = vld [vmem:[%s2 + $0x10] sm:$0xff]
      %v378 = vld [vmem:[%s2 + $0x18] sm:$0xff]
      %v379 = vld [vmem:[%s2 + $0x20] sm:$0xff]
      %v380 = vld [vmem:[%s2 + $0x28] sm:$0xff]
      %vm381 = vcmask 392192
      %v383 = vsel %vm381, %v374, 0
      %385 = vmatpush.msra.mxu0 0.0
      %386 = vmatpush.msra.mxu0 0.0
      %387 = vmatpush.msra.mxu0 0.0
      %388 = vmatpush.msra.mxu0 0.0
      %389 = vmatpush.msra.mxu0 0.0
      %390 = vmatpush.msra.mxu0 0.0
      %391 = vmatpush.msra.mxu0 0.0
      %392 = vmatpush.msra.mxu0 0.0
      %393 = vmatpush.msra.mxu0 0.0
      %394 = vmatpush.msra.mxu0 0.0
      %395 = vmatpush.msra.mxu0 %v380
      %396 = vmatpush.msra.mxu0 %v379
      %397 = vmatpush.msra.mxu0 %v378
      %398 = vmatpush.msra.mxu0 %v377
      %399 = vmatpush.msra.mxu0 %v376
      %400 = vmatpush.msra.mxu0 %v375
      %401 = vmatmul.f32.gmra.mxu0 %v383
      %v402 = vpop.f32.mrf.mxu0
      %v403 = vadd.f32 0.0, %v402
      %404 = vdwg.mxu0
      %vm405 = vcmask 23552
      %406 = vst.msk [vmem:[%s334] sm:$0xff] %vm405, %v403
      %v407 = vcvt.s32.f32 %v371
      %vm408 = vcmask 7168
      %409 = vst.msk [vmem:[%s341] sm:$0xff] %vm408, %v407
      %p410 = scmp.lt.s32.totalorder %s23, 1
      %s411 = scalar_select %p410, %s23, 1
      %p412 = scmp.lt.s32.totalorder %s22, 0
      %s413 = scalar_select %p412, %s22, 0
      %s414 = sadd.s32 %s413, %s411
      %s415 = smul.addr %s414, 8
      %s416 = scalar_lea.vmem %s5, %s415
      %p417 = scmp.lt.s32.totalorder %s23, 1
      %s418 = scalar_select %p417, %s23, 1
      %p419 = scmp.lt.s32.totalorder %s22, 0
      %s420 = scalar_select %p419, %s22, 0
      %s421 = sadd.s32 %s420, %s418
      %s422 = smul.addr %s421, 8
      %s423 = scalar_lea.vmem %s6, %s422
      // Predicated region
      $region41: #{_atom_selector_impl.1} parent=39 // pred_check
        %p424 = pneg %p174
      $region42: #{_atom_selector_impl.1} parent=39 // pred_check_branch
        %426 = sbr.rel (%p424) target = $region44
      $region43: #{_atom_selector_impl.1} parent=39 // pred_region
        _
      $region44: #{_atom_selector_impl.1} parent=39 // pred_fallthru
        _
      // Predicated region
      $region45: #{_atom_selector_impl.1} parent=39 // pred_check
        %p427 = pneg %p202
      $region46: #{_atom_selector_impl.1} parent=39 // pred_check_branch
        %429 = sbr.rel (%p427) target = $region48
      $region47: #{_atom_selector_impl.1} parent=39 // pred_region
        _
      $region48: #{_atom_selector_impl.1} parent=39 // pred_fallthru
        _
    $region40: #{_atom_selector_impl.1} parent=5 // pred_fallthru
      _
    %p430 = scmp.le.s32.totalorder 2, %s13
    // Predicated region
    $region49: #{_atom_selector_impl.1} parent=5 // pred_check
      %p431 = pneg %p430
    $region50: #{_atom_selector_impl.1} parent=5 // pred_check_branch
      %433 = sbr.rel (%p431) target = $region52
    $region51: #{_atom_selector_impl.1} parent=5 // pred_region
      %s434 = ssub.s32 %s13, 2
      // Predicated region
      $region53: #{_atom_selector_impl.1} parent=51 // pred_check
        %p435 = pneg %p180
      $region54: #{_atom_selector_impl.1} parent=51 // pred_check_branch
        %437 = sbr.rel (%p435) target = $region56
      $region55: #{_atom_selector_impl.1} parent=51 // pred_region
        %p438 = scmp.lt.s32.totalorder %s25, 1
        %s439 = scalar_select %p438, %s25, 1
        %p440 = scmp.lt.s32.totalorder %s24, 0
        %s441 = scalar_select %p440, %s24, 0
        %s442 = sadd.s32 %s441, %s439
        %s443 = smul.addr %s442, 8
        %s444 = scalar_lea.vmem %s5, %s443
      $region56: #{_atom_selector_impl.1} parent=51 // pred_fallthru
        _
      // Predicated region
      $region57: #{_atom_selector_impl.1} parent=51 // pred_check
        %p445 = pneg %p208
      $region58: #{_atom_selector_impl.1} parent=51 // pred_check_branch
        %447 = sbr.rel (%p445) target = $region60
      $region59: #{_atom_selector_impl.1} parent=51 // pred_region
        %p448 = scmp.lt.s32.totalorder %s25, 1
        %s449 = scalar_select %p448, %s25, 1
        %p450 = scmp.lt.s32.totalorder %s24, 0
        %s451 = scalar_select %p450, %s24, 0
        %s452 = sadd.s32 %s451, %s449
        %s453 = smul.addr %s452, 8
        %s454 = scalar_lea.vmem %s6, %s453
      $region60: #{_atom_selector_impl.1} parent=51 // pred_fallthru
        _
    $region52: #{_atom_selector_impl.1} parent=5 // pred_fallthru
      _
  $region6: #{_atom_selector_impl.1} parent=0 // loop_footer
    %s17 = sadd.s32 1, %s13
  $region7: #{_atom_selector_impl.1} parent=0 // loop_footer_branch
    %12 = sbr.rel target = $region3
  $region8: #{_atom_selector_impl.1} parent=0 // loop_exit
    _

</llo_original>
